<compile_context>
chip_gen: v7x
topology: tpu7x:2x2x1
jax: 0.10.0
libtpu: 0.0.40
codegen_flags: <defaults>
</compile_context>

<pallas_src>
import jax
import jax.numpy as jnp
from jax.experimental import pallas as pl
from jax.experimental.pallas import tpu as pltpu


def _round_up(x, m):
    return ((x + m - 1) // m) * m


def _sublane_pack(dtype):
    # Min sublane multiple for a packed dtype: f32 -> 8, bf16 -> 16, int8/fp8 -> 32.
    itemsize = jnp.dtype(dtype).itemsize
    return max(8, (4 // itemsize) * 8)


def _default_tm():
    # v5e: smaller scoped-VMEM default and slower HBM -> 2048 is enough.
    # v6e / v7x: bigger tiles amortize the ~0.35 us per-step overhead.
    try:
        kind = jax.devices()[0].device_kind.lower()
    except Exception:
        kind = ""
    if "v5 lite" in kind or "v5e" in kind or "v5lite" in kind:
        return 2048
    return 4096


def _vmem_step_bytes(tm, P, D, O, in_itemsize, out_itemsize):
    # VMEM cost of one grid step's streamed blocks; last dim lane-pads to 128,
    # so the (tm, 17) dur block costs as much as the (tm, 128) pitch block.
    pad = lambda n: _round_up(n, 128)
    return tm * (pad(P) + pad(D)) * in_itemsize + tm * pad(O) * out_itemsize


def fusion_kernel(pitch_ref, dur_ref, wp_ref, wd_ref, b_ref, o_ref):
    # Split-weight Linear(concat(pitch, dur)):
    #   cat(p, d) @ [Wp; Wd] + b == p @ Wp + d @ Wd + b
    acc = jnp.dot(pitch_ref[...], wp_ref[...], preferred_element_type=jnp.float32)
    acc = acc + jnp.dot(dur_ref[...], wd_ref[...], preferred_element_type=jnp.float32)
    o_ref[...] = (acc + b_ref[...]).astype(o_ref.dtype)


def fusion_layer(pitch, dur_p, wp, wd, b, *, tm=None, out_dtype=None):
    """pitch: (B, S, pitch_dim); dur_p: (B, S, dur_dim)
       wp: (pitch_dim, out_dim)   (pre-split, transposed vs PyTorch)
       wd: (dur_dim,   out_dim)
       b:  (out_dim,)
       tm: rows per tile; default is chip-dependent (2048 on v5e, 4096 on
           v6e/v7x) and is automatically shrunk to fit VMEM / keep >=8 steps.
       out_dtype: e.g. jnp.bfloat16 to emit a bf16 output stream (accumulation
           and bias remain f32). Default: same dtype as `pitch`.
    """
    B, S, P = pitch.shape
    D = dur_p.shape[-1]
    O = wp.shape[-1]
    rows = B * S
    out_dtype = jnp.dtype(pitch.dtype if out_dtype is None else out_dtype)

    pitch2d = pitch.reshape(rows, P)
    dur2d = dur_p.reshape(rows, D)
    b2d = b.reshape(1, O).astype(jnp.float32)  # bias added in the f32 accumulator

    in_isize = jnp.dtype(pitch.dtype).itemsize
    out_isize = out_dtype.itemsize
    w_isize = jnp.dtype(wp.dtype).itemsize

    # Sublane packing constraint across every streamed array (inputs + output).
    pack = max(_sublane_pack(pitch.dtype), _sublane_pack(dur_p.dtype),
               _sublane_pack(out_dtype))

    if tm is None:
        tm = _default_tm()

    rows_pad = _round_up(rows, pack)
    tm_eff = min(tm, rows_pad)

    # Keep >= ~8 grid steps when the problem is big enough, so the parallel
    # grid axis keeps both TensorCores busy (v7x) and the pipeline overlaps.
    if rows_pad >= 8 * 512 and pl.cdiv(rows_pad, tm_eff) < 8:
        tm_eff = max(512, _round_up(-(-rows_pad // 8), pack))
    tm_eff = max(pack, _round_up(tm_eff, pack))

    # VMEM budget: 2x buffering of all three streams must fit comfortably even
    # on v7x (64 MiB physical). Shrink tm until it does.
    VMEM_CAP = 44 * 1024 * 1024
    while tm_eff > pack and 2 * _vmem_step_bytes(tm_eff, P, D, O, in_isize, out_isize) > VMEM_CAP:
        tm_eff = max(pack, _round_up(tm_eff // 2, pack))

    needed = 2 * _vmem_step_bytes(tm_eff, P, D, O, in_isize, out_isize)
    needed += (_round_up(P, 8) + _round_up(D, 8)) * _round_up(O, 128) * w_isize
    needed += 4 * _round_up(O, 128)  # bias
    vmem_limit = None
    if needed > 14 * 1024 * 1024:  # above the v5e 16 MiB scoped default -> raise it
        vmem_limit = int(min(needed + (4 << 20), 48 * 1024 * 1024))

    grid = (pl.cdiv(rows, tm_eff),)  # partial last tile handled by Pallas masking

    out2d = pl.pallas_call(
        fusion_kernel,
        out_shape=jax.ShapeDtypeStruct((rows, O), out_dtype),
        grid=grid,
        in_specs=[
            pl.BlockSpec((tm_eff, P), lambda i: (i, 0)),   # streamed per tile
            pl.BlockSpec((tm_eff, D), lambda i: (i, 0)),   # streamed per tile
            pl.BlockSpec((P, O), lambda i: (0, 0)),        # VMEM-resident weights
            pl.BlockSpec((D, O), lambda i: (0, 0)),        # VMEM-resident weights
            pl.BlockSpec((1, O), lambda i: (0, 0)),        # VMEM-resident bias
        ],
        out_specs=pl.BlockSpec((tm_eff, O), lambda i: (i, 0)),
        compiler_params=pltpu.CompilerParams(
            dimension_semantics=("parallel",),             # rows independent
            vmem_limit_bytes=vmem_limit),
    )(pitch2d, dur2d, wp, wd, b2d)

    return out2d.reshape(B, S, O)


def init_params(key, pitch_dim=128, dur_dim=17, out_dim=128):
    # Deterministic init mimicking nn.Linear: U(-1/sqrt(fan_in), 1/sqrt(fan_in)).
    # Stored pre-split and transposed: wp (pitch_dim, out), wd (dur_dim, out),
    # so the per-call path does no slicing of the weight matrix.
    in_dim = pitch_dim + dur_dim
    bound = 1.0 / (in_dim ** 0.5)
    kw, kb = jax.random.split(key)
    w = jax.random.uniform(kw, (in_dim, out_dim), jnp.float32, -bound, bound)
    b = jax.random.uniform(kb, (out_dim,), jnp.float32, -bound, bound)
    wp = w[:pitch_dim, :]
    wd = w[pitch_dim:, :]
    return wp, wd, b


if __name__ == "__main__":
    key = jax.random.PRNGKey(0)
    k1, k2, k3 = jax.random.split(key, 3)

    pitch_dim, dur_dim, out_dim = 128, 17, 128
    wp, wd, b = init_params(k3, pitch_dim, dur_dim, out_dim)
    w_full = jnp.concatenate([wp, wd], axis=0)

    # --- primary small test (single tile, auto tm) ---
    B, S = 2, 8
    pitch = jax.random.normal(k1, (B, S, pitch_dim), jnp.float32)
    dur_p = jax.random.normal(k2, (B, S, dur_dim), jnp.float32)

    out = jax.block_until_ready(fusion_layer(pitch, dur_p, wp, wd, b))
    ref = jnp.concatenate([pitch, dur_p], axis=-1) @ w_full + b
    assert out.shape == (B, S, out_dim)
    assert jnp.allclose(out, ref, atol=1e-4, rtol=1e-4)

    # --- multi-tile test with a partial last tile (exercises boundary masking) ---
    B2, S2 = 2, 200  # rows = 400, tm=128 -> grid of 4 with a 16-row tail
    pitch2 = jax.random.normal(k1, (B2, S2, pitch_dim), jnp.float32)
    dur_p2 = jax.random.normal(k2, (B2, S2, dur_dim), jnp.float32)
    out2 = jax.block_until_ready(fusion_layer(pitch2, dur_p2, wp, wd, b, tm=128))
    ref2 = jnp.concatenate([pitch2, dur_p2], axis=-1) @ w_full + b
    assert jnp.allclose(out2, ref2, atol=1e-4, rtol=1e-4)

    # --- bf16 OUTPUT stream (f32 inputs/accumulation; cuts output HBM bytes) ---
    out_bf16 = jax.block_until_ready(
        fusion_layer(pitch2, dur_p2, wp, wd, b, tm=128, out_dtype=jnp.bfloat16))
    assert out_bf16.dtype == jnp.bfloat16
    assert jnp.allclose(out_bf16.astype(jnp.float32), ref2, atol=5e-2, rtol=5e-2)

    print("KERNEL_OK")
</pallas_src>

<mosaic_0001>
module attributes {stable_mosaic.version = 11 : i64} {
  func.func @fusion_kernel(%arg0: i32, %arg1: memref<16x128xf32, #tpu.memory_space<vmem>>, %arg2: memref<16x17xf32, #tpu.memory_space<vmem>>, %arg3: memref<128x128xf32, #tpu.memory_space<vmem>>, %arg4: memref<17x128xf32, #tpu.memory_space<vmem>>, %arg5: memref<1x128xf32, #tpu.memory_space<vmem>>, %arg6: memref<16x128xf32, #tpu.memory_space<vmem>>) attributes {dimension_semantics = [#tpu.dimension_semantics<parallel>], iteration_bounds = array<i64: 1>, scalar_prefetch = 0 : i64, scratch_operands = 0 : i64, tpu.core_type = #tpu.core_type<tc>, window_params = [{transform_indices = @transform_0, window_bounds = array<i64: 16, 128>}, {transform_indices = @transform_1, window_bounds = array<i64: 16, 17>}, {pipeline_mode = #tpu.pipeline_mode<synchronous>, transform_indices = @transform_2, window_bounds = array<i64: 128, 128>}, {pipeline_mode = #tpu.pipeline_mode<synchronous>, transform_indices = @transform_3, window_bounds = array<i64: 17, 128>}, {pipeline_mode = #tpu.pipeline_mode<synchronous>, transform_indices = @transform_4, window_bounds = array<i64: 1, 128>}, {transform_indices = @transform_5, window_bounds = array<i64: 16, 128>}]} {
    %c0 = arith.constant 0 : index
    %c0_0 = arith.constant 0 : index
    %0 = vector.load %arg1[%c0, %c0_0] : memref<16x128xf32, #tpu.memory_space<vmem>>, vector<16x128xf32>
    %c0_1 = arith.constant 0 : index
    %c0_2 = arith.constant 0 : index
    %1 = vector.load %arg3[%c0_1, %c0_2] : memref<128x128xf32, #tpu.memory_space<vmem>>, vector<128x128xf32>
    %cst = arith.constant dense<0.000000e+00> : vector<16x128xf32>
    %2 = tpu.matmul %0, %1, %cst {dimension_numbers = #tpu.dot_dimension_numbers<[1], [0], [0], [1], [0, 0, 1, 1], [], []>} : vector<16x128xf32>, vector<128x128xf32>, vector<16x128xf32> -> vector<16x128xf32>
    %c0_3 = arith.constant 0 : index
    %c0_4 = arith.constant 0 : index
    %3 = vector.load %arg2[%c0_3, %c0_4] : memref<16x17xf32, #tpu.memory_space<vmem>>, vector<16x17xf32>
    %c0_5 = arith.constant 0 : index
    %c0_6 = arith.constant 0 : index
    %4 = vector.load %arg4[%c0_5, %c0_6] : memref<17x128xf32, #tpu.memory_space<vmem>>, vector<17x128xf32>
    %cst_7 = arith.constant dense<0.000000e+00> : vector<16x128xf32>
    %5 = tpu.matmul %3, %4, %cst_7 {dimension_numbers = #tpu.dot_dimension_numbers<[1], [0], [0], [1], [0, 0, 1, 1], [], []>} : vector<16x17xf32>, vector<17x128xf32>, vector<16x128xf32> -> vector<16x128xf32>
    %6 = arith.addf %2, %5 : vector<16x128xf32>
    %c0_8 = arith.constant 0 : index
    %c0_9 = arith.constant 0 : index
    %7 = vector.load %arg5[%c0_8, %c0_9] : memref<1x128xf32, #tpu.memory_space<vmem>>, vector<1x128xf32>
    %8 = vector.broadcast %7 : vector<1x128xf32> to vector<16x128xf32>
    %9 = arith.addf %6, %8 : vector<16x128xf32>
    %c0_10 = arith.constant 0 : index
    %c0_11 = arith.constant 0 : index
    %10 = vector.load %arg6[%c0_10, %c0_11] : memref<16x128xf32, #tpu.memory_space<vmem>>, vector<16x128xf32>
    tpu.vector_store %arg6[%c0_10, %c0_11], %9 {strides = array<i32>} : memref<16x128xf32, #tpu.memory_space<vmem>>, vector<16x128xf32>,
    return
  }
  func.func @transform_0(%arg0: i32) -> (i32, i32) {
    %c0_i32 = arith.constant 0 : i32
    %c0_i32_0 = arith.constant 0 : i32
    return %arg0, %c0_i32 : i32, i32
  }
  func.func @transform_1(%arg0: i32) -> (i32, i32) {
    %c0_i32 = arith.constant 0 : i32
    %c0_i32_0 = arith.constant 0 : i32
    return %arg0, %c0_i32 : i32, i32
  }
  func.func @transform_2(%arg0: i32) -> (i32, i32) {
    %c0_i32 = arith.constant 0 : i32
    %c0_i32_0 = arith.constant 0 : i32
    %c0_i32_1 = arith.constant 0 : i32
    return %c0_i32, %c0_i32_0 : i32, i32
  }
  func.func @transform_3(%arg0: i32) -> (i32, i32) {
    %c0_i32 = arith.constant 0 : i32
    %c0_i32_0 = arith.constant 0 : i32
    %c0_i32_1 = arith.constant 0 : i32
    return %c0_i32, %c0_i32_0 : i32, i32
  }
  func.func @transform_4(%arg0: i32) -> (i32, i32) {
    %c0_i32 = arith.constant 0 : i32
    %c0_i32_0 = arith.constant 0 : i32
    %c0_i32_1 = arith.constant 0 : i32
    return %c0_i32, %c0_i32_0 : i32, i32
  }
  func.func @transform_5(%arg0: i32) -> (i32, i32) {
    %c0_i32 = arith.constant 0 : i32
    %c0_i32_0 = arith.constant 0 : i32
    return %arg0, %c0_i32 : i32, i32
  }
}

</mosaic_0001>

<llo_original>
// kernel: tpu_custom_call.1
$region0: #{tpu_custom_call.1}
  #allocation0 [shape = 'u32[]', space=smem, size = 0x4, offset = 0x4, fixed_abs, tag = 'smem constant byte address 0x4 - core index']
  #allocation1 [shape = 'u32[144,128]{1,0:T(1,128)}', space=vmem, size = 0x12000, scoped, tag = 'internal scratch']
  %s0 = inlined_call_operand.hbm [shape: f32[16,128], index: 0, kind: input, shape index: {}]
  %s1 = inlined_call_operand.hbm [shape: f32[16,17], index: 1, kind: input, shape index: {}]
  %s2 = inlined_call_operand.hbm [shape: f32[128,128], index: 2, kind: input, shape index: {}]
  %s3 = inlined_call_operand.hbm [shape: f32[17,128], index: 3, kind: input, shape index: {}]
  %s4 = inlined_call_operand.vmem [shape: f32[1,128], index: 4, kind: input, shape index: {}]
  %s5 = inlined_call_operand.hbm [shape: f32[16,128], index: 5, kind: output, shape index: {}]
  %s6 = sld [smem:[#allocation0]]
  $region46: #{tpu_custom_call.1} parent=0
    _
  %s8 = ssub.s32 1, %s6
  %s9 = scalar_select 0, %s8, %s6
  $region1: #{tpu_custom_call.1} parent=0
    #allocation2 [shape = 'u8[8192]{0}', space=vmem, size = 0x2000, scoped, tag = 'input window, operand 0, single buffered']
    #allocation3 [shape = 's32[1]{0}', space=sflag, size = 0x4, scoped, tag = 'scoped memory for tpu_custom_call.1']
    #allocation4 [shape = 's32[1]{0}', space=sflag, size = 0x4, scoped, tag = 'scoped memory for tpu_custom_call.1']
    #allocation5 [shape = 'u8[8192]{0}', space=vmem, size = 0x2000, scoped, tag = 'input window, operand 1, single buffered']
    #allocation6 [shape = 's32[1]{0}', space=sflag, size = 0x4, scoped, tag = 'scoped memory for tpu_custom_call.1']
    #allocation7 [shape = 'u8[65536]{0}', space=vmem, size = 0x10000, scoped, tag = 'input window, operand 2, single buffered']
    #allocation8 [shape = 'u8[12288]{0}', space=vmem, size = 0x3000, scoped, tag = 'input window, operand 3, single buffered']
    #allocation9 [shape = 's32[1]{0}', space=sflag, size = 0x4, scoped, tag = 'scoped memory for tpu_custom_call.1']
    #allocation10 [shape = 'u8[8192]{0}', space=vmem, size = 0x2000, scoped, tag = 'output window, operand 0, single buffered']
    %10 = vsyncpa [#allocation3], 0
    %11 = vsyncpa [#allocation6], 0
    %12 = vsyncpa [#allocation9], 0
    %13 = vsyncpa [#allocation4], 0
    // Predicated region
    $region2: #{tpu_custom_call.1} parent=1 // pred_check
      _
    $region3: #{tpu_custom_call.1} parent=1 // pred_check_branch
      %15 = sbr.rel (0) target = $region5
    $region4: #{tpu_custom_call.1} parent=1 // pred_region
      %s17 = ssub.s32 256, 256
      %18 = vsyncadd [#allocation3], %s17
      %s19 = sshll.u32 [#allocation2], 4
      %s20 = int_to_ptr.vmem [resolvable:$true] %s19
      %25 = dma.hbm_to_vmem [thread:$0]  %s0, 256, %s20, [#allocation3], 128, 128, 8
    $region5: #{tpu_custom_call.1} parent=1 // pred_fallthru
      _
    // Predicated region
    $region6: #{tpu_custom_call.1} parent=1 // pred_check
      _
    $region7: #{tpu_custom_call.1} parent=1 // pred_check_branch
      %27 = sbr.rel (0) target = $region9
    $region8: #{tpu_custom_call.1} parent=1 // pred_region
      %s29 = ssub.s32 256, 256
      %30 = vsyncadd [#allocation6], %s29
      %s31 = sshll.u32 [#allocation5], 4
      %s32 = int_to_ptr.vmem [resolvable:$true] %s31
      %37 = dma.hbm_to_vmem [thread:$0]  %s1, 256, %s32, [#allocation6], 128, 128, 8
    $region9: #{tpu_custom_call.1} parent=1 // pred_fallthru
      _
    // Predicated region
    $region10: #{tpu_custom_call.1} parent=1 // pred_check
      _
    $region11: #{tpu_custom_call.1} parent=1 // pred_check_branch
      %39 = sbr.rel (0) target = $region13
    $region12: #{tpu_custom_call.1} parent=1 // pred_region
      %s41 = ssub.s32 2048, 2048
      %42 = vsyncadd [#allocation6], %s41
      %s43 = sshll.u32 [#allocation7], 4
      %s44 = int_to_ptr.vmem [resolvable:$true] %s43
      %49 = dma.hbm_to_vmem [thread:$0]  %s2, 2048, %s44, [#allocation6], 128, 128, 8
    $region13: #{tpu_custom_call.1} parent=1 // pred_fallthru
      _
    // Predicated region
    $region14: #{tpu_custom_call.1} parent=1 // pred_check
      _
    $region15: #{tpu_custom_call.1} parent=1 // pred_check_branch
      %51 = sbr.rel (0) target = $region17
    $region16: #{tpu_custom_call.1} parent=1 // pred_region
      %s53 = ssub.s32 384, 384
      %54 = vsyncadd [#allocation9], %s53
      %s55 = sshll.u32 [#allocation8], 4
      %s56 = int_to_ptr.vmem [resolvable:$true] %s55
      %61 = dma.hbm_to_vmem [thread:$0]  %s3, 384, %s56, [#allocation9], 128, 128, 8
    $region17: #{tpu_custom_call.1} parent=1 // pred_fallthru
      _
    // Predicated region
    $region18: #{tpu_custom_call.1} parent=1 // pred_check
      _
    $region19: #{tpu_custom_call.1} parent=1 // pred_check_branch
      %63 = sbr.rel (0) target = $region21
    $region20: #{tpu_custom_call.1} parent=1 // pred_region
      _
    $region21: #{tpu_custom_call.1} parent=1 // pred_fallthru
      _
    // Predicated region
    $region22: #{tpu_custom_call.1} parent=1 // pred_check
      _
    $region23: #{tpu_custom_call.1} parent=1 // pred_check_branch
      %65 = sbr.rel (0) target = $region25
    $region24: #{tpu_custom_call.1} parent=1 // pred_region
      %66 = dma.done [#allocation3], 256
    $region25: #{tpu_custom_call.1} parent=1 // pred_fallthru
      _
    // Predicated region
    $region26: #{tpu_custom_call.1} parent=1 // pred_check
      _
    $region27: #{tpu_custom_call.1} parent=1 // pred_check_branch
      %68 = sbr.rel (0) target = $region29
    $region28: #{tpu_custom_call.1} parent=1 // pred_region
      %69 = dma.done [#allocation6], 256
    $region29: #{tpu_custom_call.1} parent=1 // pred_fallthru
      _
    // Predicated region
    $region30: #{tpu_custom_call.1} parent=1 // pred_check
      _
    $region31: #{tpu_custom_call.1} parent=1 // pred_check_branch
      %71 = sbr.rel (0) target = $region33
    $region32: #{tpu_custom_call.1} parent=1 // pred_region
      %72 = dma.done [#allocation6], 2048
    $region33: #{tpu_custom_call.1} parent=1 // pred_fallthru
      _
    // Predicated region
    $region34: #{tpu_custom_call.1} parent=1 // pred_check
      _
    $region35: #{tpu_custom_call.1} parent=1 // pred_check_branch
      %74 = sbr.rel (0) target = $region37
    $region36: #{tpu_custom_call.1} parent=1 // pred_region
      %75 = dma.done [#allocation9], 384
    $region37: #{tpu_custom_call.1} parent=1 // pred_fallthru
      _
    %v76 = vld [vmem:[#allocation2] sm:$0xff]
    %v77 = vld [vmem:[#allocation2 + $0x8] sm:$0xff]
    %v78 = vld [vmem:[#allocation7] sm:$0xff]
    %v79 = vld [vmem:[#allocation7 + $0x8] sm:$0xff]
    %v80 = vld [vmem:[#allocation7 + $0x10] sm:$0xff]
    %v81 = vld [vmem:[#allocation7 + $0x18] sm:$0xff]
    %v82 = vld [vmem:[#allocation7 + $0x20] sm:$0xff]
    %v83 = vld [vmem:[#allocation7 + $0x28] sm:$0xff]
    %v84 = vld [vmem:[#allocation7 + $0x30] sm:$0xff]
    %v85 = vld [vmem:[#allocation7 + $0x38] sm:$0xff]
    %v86 = vld [vmem:[#allocation7 + $0x40] sm:$0xff]
    %v87 = vld [vmem:[#allocation7 + $0x48] sm:$0xff]
    %v88 = vld [vmem:[#allocation7 + $0x50] sm:$0xff]
    %v89 = vld [vmem:[#allocation7 + $0x58] sm:$0xff]
    %v90 = vld [vmem:[#allocation7 + $0x60] sm:$0xff]
    %v91 = vld [vmem:[#allocation7 + $0x68] sm:$0xff]
    %v92 = vld [vmem:[#allocation7 + $0x70] sm:$0xff]
    %v93 = vld [vmem:[#allocation7 + $0x78] sm:$0xff]
    %v94 = vld [vmem:[#allocation5] sm:$0xff]
    %v95 = vld [vmem:[#allocation5 + $0x8] sm:$0xff]
    %v96 = vld [vmem:[#allocation8] sm:$0xff]
    %v97 = vld [vmem:[#allocation8 + $0x8] sm:$0xff]
    %v98 = vld [vmem:[#allocation8 + $0x10] sm:$0x1]
    %vm99 = vcmask 138240
    %v101 = vsel %vm99, %v94, 0
    %v104 = vsel %vm99, %v95, 0
    %vm106 = vcmask 1040384
    %v108 = vsel %vm106, %v98, 0
    %110 = vmatprep.subr.mxu0 0.0
    %111 = vmatpush1.msra.mxu0 %v96
    %112 = vmatprep.subr.mxu0 0.0
    %113 = vmatpush1.msra.mxu0 %v97
    %114 = vmatprep.subr.mxu0 0.0
    %115 = vmatpush1.msra.mxu0 %v108
    %116 = vmatprep.subr.mxu0 0.0
    %117 = vmatpush1.msra.mxu0 0.0
    %118 = vmatprep.subr.mxu0 0.0
    %119 = vmatpush1.msra.mxu0 0.0
    %120 = vmatprep.subr.mxu0 0.0
    %121 = vmatpush1.msra.mxu0 0.0
    %122 = vmatprep.subr.mxu0 0.0
    %123 = vmatpush1.msra.mxu0 0.0
    %124 = vmatprep.subr.mxu0 0.0
    %125 = vmatpush1.msra.mxu0 0.0
    %126 = vmatprep.subr.mxu0 0.0
    %127 = vmatpush1.msra.mxu0 0.0
    %128 = vmatprep.subr.mxu0 0.0
    %129 = vmatpush1.msra.mxu0 0.0
    %130 = vmatprep.subr.mxu0 0.0
    %131 = vmatpush1.msra.mxu0 0.0
    %132 = vmatprep.subr.mxu0 0.0
    %133 = vmatpush1.msra.mxu0 0.0
    %134 = vmatprep.subr.mxu0 0.0
    %135 = vmatpush1.msra.mxu0 0.0
    %136 = vmatprep.subr.mxu0 0.0
    %137 = vmatpush1.msra.mxu0 0.0
    %138 = vmatprep.subr.mxu0 0.0
    %139 = vmatpush1.msra.mxu0 0.0
    %140 = vmatprep.subr.mxu0 0.0
    %141 = vmatpush1.msra.mxu0 0.0
    %142 = vmatprep.subr.mxu0 0.0
    %143 = vmatpush1.msra.mxu0 0.0
    %144 = vmatprep.subr.mxu0 0.0
    %145 = vmatpush1.msra.mxu0 0.0
    %146 = vmatprep.subr.mxu0 0.0
    %147 = vmatpush1.msra.mxu0 0.0
    %148 = vmatprep.subr.mxu0 0.0
    %149 = vmatpush1.msra.mxu0 0.0
    %150 = vmatprep.subr.mxu0 0.0
    %151 = vmatpush1.msra.mxu0 0.0
    %152 = vmatprep.subr.mxu0 0.0
    %153 = vmatpush1.msra.mxu0 0.0
    %154 = vmatprep.subr.mxu0 0.0
    %155 = vmatpush1.msra.mxu0 0.0
    %156 = vmatprep.subr.mxu0 0.0
    %157 = vmatpush1.msra.mxu0 0.0
    %158 = vmatprep.subr.mxu0 0.0
    %159 = vmatpush1.msra.mxu0 0.0
    %160 = vmatprep.subr.mxu0 0.0
    %161 = vmatpush1.msra.mxu0 0.0
    %162 = vmatprep.subr.mxu0 0.0
    %163 = vmatpush1.msra.mxu0 0.0
    %164 = vmatprep.subr.mxu0 0.0
    %165 = vmatpush1.msra.mxu0 0.0
    %166 = vmatprep.subr.mxu0 0.0
    %167 = vmatpush1.msra.mxu0 0.0
    %168 = vmatprep.subr.mxu0 0.0
    %169 = vmatpush1.msra.mxu0 0.0
    %170 = vmatprep.subr.mxu0 0.0
    %171 = vmatpush1.msra.mxu0 0.0
    %172 = vmatprep.subr.mxu0 0.0
    %173 = vmatpush1.msra.mxu0 0.0
    %174 = vmatprep.mubr.f32.mxu0 0.0
    %175 = vmatmul.mubr.f32.gmra.mrb[0].mxu0 %v101
    %v176 = vpop.f32.mrb[0].mxu0
    %v177 = vadd.f32 0.0, %v176
    %v178 = vpop.f32.mrb[0].mxu0
    %179 = vmatprep.mubr.f32.mxu0 0.0
    %180 = vmatmul.mubr.f32.gmra.mrb[0].mxu0 %v104
    %v181 = vpop.f32.mrb[0].mxu0
    %v182 = vadd.f32 0.0, %v181
    %v183 = vpop.f32.mrb[0].mxu0
    %184 = vdwg.mxu0
    %185 = vmatprep.subr.mxu0 0.0
    %186 = vmatpush1.msra.mxu0 %v78
    %187 = vmatprep.subr.mxu0 0.0
    %188 = vmatpush1.msra.mxu0 %v79
    %189 = vmatprep.subr.mxu0 0.0
    %190 = vmatpush1.msra.mxu0 %v80
    %191 = vmatprep.subr.mxu0 0.0
    %192 = vmatpush1.msra.mxu0 %v81
    %193 = vmatprep.subr.mxu0 0.0
    %194 = vmatpush1.msra.mxu0 %v82
    %195 = vmatprep.subr.mxu0 0.0
    %196 = vmatpush1.msra.mxu0 %v83
    %197 = vmatprep.subr.mxu0 0.0
    %198 = vmatpush1.msra.mxu0 %v84
    %199 = vmatprep.subr.mxu0 0.0
    %200 = vmatpush1.msra.mxu0 %v85
    %201 = vmatprep.subr.mxu0 0.0
    %202 = vmatpush1.msra.mxu0 %v86
    %203 = vmatprep.subr.mxu0 0.0
    %204 = vmatpush1.msra.mxu0 %v87
    %205 = vmatprep.subr.mxu0 0.0
    %206 = vmatpush1.msra.mxu0 %v88
    %207 = vmatprep.subr.mxu0 0.0
    %208 = vmatpush1.msra.mxu0 %v89
    %209 = vmatprep.subr.mxu0 0.0
    %210 = vmatpush1.msra.mxu0 %v90
    %211 = vmatprep.subr.mxu0 0.0
    %212 = vmatpush1.msra.mxu0 %v91
    %213 = vmatprep.subr.mxu0 0.0
    %214 = vmatpush1.msra.mxu0 %v92
    %215 = vmatprep.subr.mxu0 0.0
    %216 = vmatpush1.msra.mxu0 %v93
    %217 = vmatprep.subr.mxu0 0.0
    %218 = vmatpush1.msra.mxu0 0.0
    %219 = vmatprep.subr.mxu0 0.0
    %220 = vmatpush1.msra.mxu0 0.0
    %221 = vmatprep.subr.mxu0 0.0
    %222 = vmatpush1.msra.mxu0 0.0
    %223 = vmatprep.subr.mxu0 0.0
    %224 = vmatpush1.msra.mxu0 0.0
    %225 = vmatprep.subr.mxu0 0.0
    %226 = vmatpush1.msra.mxu0 0.0
    %227 = vmatprep.subr.mxu0 0.0
    %228 = vmatpush1.msra.mxu0 0.0
    %229 = vmatprep.subr.mxu0 0.0
    %230 = vmatpush1.msra.mxu0 0.0
    %231 = vmatprep.subr.mxu0 0.0
    %232 = vmatpush1.msra.mxu0 0.0
    %233 = vmatprep.subr.mxu0 0.0
    %234 = vmatpush1.msra.mxu0 0.0
    %235 = vmatprep.subr.mxu0 0.0
    %236 = vmatpush1.msra.mxu0 0.0
    %237 = vmatprep.subr.mxu0 0.0
    %238 = vmatpush1.msra.mxu0 0.0
    %239 = vmatprep.subr.mxu0 0.0
    %240 = vmatpush1.msra.mxu0 0.0
    %241 = vmatprep.subr.mxu0 0.0
    %242 = vmatpush1.msra.mxu0 0.0
    %243 = vmatprep.subr.mxu0 0.0
    %244 = vmatpush1.msra.mxu0 0.0
    %245 = vmatprep.subr.mxu0 0.0
    %246 = vmatpush1.msra.mxu0 0.0
    %247 = vmatprep.subr.mxu0 0.0
    %248 = vmatpush1.msra.mxu0 0.0
    %249 = vmatprep.mubr.f32.mxu0 0.0
    %250 = vmatmul.mubr.f32.gmra.mrb[0].mxu0 %v76
    %v251 = vpop.f32.mrb[0].mxu0
    %v252 = vadd.f32 %v177, %v251
    %v253 = vpop.f32.mrb[0].mxu0
    %254 = vmatprep.mubr.f32.mxu0 0.0
    %255 = vmatmul.mubr.f32.gmra.mrb[0].mxu0 %v77
    %v256 = vpop.f32.mrb[0].mxu0
    %v257 = vadd.f32 %v182, %v256
    %v258 = vpop.f32.mrb[0].mxu0
    %259 = vdwg.mxu0
    %v260 = vld [vmem:[%s4] sm:$0x1]
    %v262 = vlaneseq
    %v263 = vshrl.u32 %v262, 7
    %v264 = vsub.s32 0, %v263
    %v265 = vrot.slane %v260, %v264
    %v267 = vadd.f32 %v252, %v265
    %v268 = vadd.f32 %v257, %v265
    %269 = vst [vmem:[#allocation10] sm:$0xff] %v267
    %270 = vst [vmem:[#allocation10 + $0x8] sm:$0xff] %v268
    // Predicated region
    $region38: #{tpu_custom_call.1} parent=1 // pred_check
      _
    $region39: #{tpu_custom_call.1} parent=1 // pred_check_branch
      %272 = sbr.rel (0) target = $region41
    $region40: #{tpu_custom_call.1} parent=1 // pred_region
      %s274 = ssub.s32 256, 256
      %275 = vsyncadd [#allocation4], %s274
      %s276 = sshll.u32 [#allocation10], 4
      %s277 = int_to_ptr.vmem [resolvable:$true] %s276
      %282 = dma.vmem_to_hbm [thread:$0]  %s277, 256, %s5, [#allocation4], 128, 128, 8
    $region41: #{tpu_custom_call.1} parent=1 // pred_fallthru
      _
    // Predicated region
    $region42: #{tpu_custom_call.1} parent=1 // pred_check
      _
    $region43: #{tpu_custom_call.1} parent=1 // pred_check_branch
      %284 = sbr.rel (0) target = $region45
    $region44: #{tpu_custom_call.1} parent=1 // pred_region
      %285 = dma.done [#allocation4], 256
    $region45: #{tpu_custom_call.1} parent=1 // pred_fallthru
      _
    %286 = vsyncpa [#allocation3], 1
    %287 = vsyncpa [#allocation6], 1
    %288 = vsyncpa [#allocation9], 1
    %289 = vsyncpa [#allocation4], 1

</llo_original>
